<compile_context>
chip_gen: v5e
topology: v5e:2x2
jax: 0.10.0
libtpu: 0.0.40
codegen_flags: <defaults>
</compile_context>

<pallas_src>
import jax
import jax.numpy as jnp
from jax.experimental import pallas as pl
from jax.experimental.pallas import tpu as pltpu


# ----------------------------- kernels ------------------------------------- #

def _atom_kernel(nf_ref, w_aa_ref, a_ref, bias_ref, out_ref):
    # nf_ref:   (Bt, N, Fa)  node-feature block (Bt batches per grid step)
    # w_aa_ref: (Fa, H)      linear_AA weight (stored as [in, out])
    # a_ref:    (Bt, N, N)   adjacency block
    # bias_ref: (1, H)       self.bias
    # out_ref:  (Bt, N, H)
    bt = a_ref.shape[0]
    # Statically unrolled per-batch 2-D dots: Bt is small (~128//N), the path is
    # memory-bound, and this keeps every op a plain MXU dot for arbitrary N / Fa.
    for i in range(bt):
        am = jnp.dot(nf_ref[i], w_aa_ref[...],
                     preferred_element_type=jnp.float32)                   # (N, H)
        ax = jnp.dot(a_ref[i].astype(jnp.float32), am,
                     preferred_element_type=jnp.float32) + bias_ref[...]   # (N, H)
        out_ref[i] = jnp.maximum(ax, 0.0).astype(out_ref.dtype)


def _pair_kernel(pf_ref, w_pp_ref, b_pp_ref, a_ref, bias_ref, out_ref):
    # pf_ref:   (T, P)  row tile of flattened pair features
    # w_pp_ref: (P, H)  linear_PP weight
    # b_pp_ref: (1, H)  linear_PP bias
    # a_ref:    (T, 1)  matching adjacency values (lane-broadcast multiplier)
    # bias_ref: (1, H)  self.bias
    # out_ref:  (T, H)
    pm = jnp.dot(pf_ref[...], w_pp_ref[...],
                 preferred_element_type=jnp.float32)                       # (T, H)
    pm = jnp.maximum(pm + b_pp_ref[...], 0.0)                              # ReLU(linear_PP)
    px = a_ref[...].astype(jnp.float32) * pm + bias_ref[...]               # A * pm + bias
    out_ref[...] = jnp.maximum(px, 0.0).astype(out_ref.dtype)


# ----------------------------- tiling helpers ------------------------------- #

def _tpu_budget():
    """(pair row-tile cap, vmem_limit_bytes), generation-aware with a safe fallback."""
    try:
        vmem = pltpu.get_tpu_info().vmem_capacity_bytes
    except Exception:
        vmem = 64 * 1024 * 1024
    if vmem >= 100 * 1024 * 1024:            # v5e / v6e: 128 MiB physical VMEM
        return 8192, 96 * 1024 * 1024
    return 4096, 48 * 1024 * 1024            # v7x: 64 MiB per TensorCore


def _pick_row_tile(total_rows, cap_rows):
    """Row tile that is (a) the full extent, (b) a multiple-of-8 divisor of total_rows,
    or (c) a multiple of 8 with a masked partial tail block (rare fallback)."""
    if total_rows <= cap_rows:
        return total_rows
    t = max(8, cap_rows - cap_rows % 8)
    d = t
    while d >= 8:
        if total_rows % d == 0:
            return d
        d -= 8
    return t


def _pick_batch_tile(batch, n_nodes, target_rows=128):
    """Batches per atom grid step: ~target_rows rows of M, exact divisor of batch."""
    bt = max(1, min(batch, target_rows // max(n_nodes, 1)))
    for d in range(bt, 0, -1):               # 1 always divides batch
        if batch % d == 0:
            return d
    return 1


# ----------------------------- wrapper -------------------------------------- #

def graph_conv_layer(node_feats, pair_feats, A, params, *, out_dtype=None):
    """Forward pass of GraphConvLayer(update_pair=True, weave=False)."""
    B, N, Fa = node_feats.shape
    P = pair_feats.shape[-1]
    w_aa = params["w_aa"]                                   # (Fa, H)
    w_pp = params["w_pp"]                                   # (P, H)
    H = w_aa.shape[1]
    b_pp = params["b_pp"].reshape(1, H).astype(jnp.float32)
    bias = params["bias"].reshape(1, H).astype(jnp.float32)
    out_dtype = node_feats.dtype if out_dtype is None else out_dtype
    itm = jnp.dtype(node_feats.dtype).itemsize
    otm = jnp.dtype(out_dtype).itemsize

    pair_tile_cap, vmem_limit = _tpu_budget()

    # --- atom path: ReLU(A @ (X @ W_aa) + bias), Bt batches per grid step ---
    Bt = _pick_batch_tile(B, N)
    atom_cost = pl.CostEstimate(
        flops=2 * B * N * Fa * H + 2 * B * N * N * H,
        transcendentals=0,
        bytes_accessed=(B * N * Fa + Fa * H + B * N * N + H) * itm + B * N * H * otm,
    )
    atom_y = pl.pallas_call(
        _atom_kernel,
        out_shape=jax.ShapeDtypeStruct((B, N, H), out_dtype),
        grid=(pl.cdiv(B, Bt),),
        in_specs=[
            pl.BlockSpec((Bt, N, Fa), lambda b: (b, 0, 0)),
            pl.BlockSpec((Fa, H), lambda b: (0, 0)),
            pl.BlockSpec((Bt, N, N), lambda b: (b, 0, 0)),
            pl.BlockSpec((1, H), lambda b: (0, 0)),
        ],
        out_specs=pl.BlockSpec((Bt, N, H), lambda b: (b, 0, 0)),
        compiler_params=pltpu.CompilerParams(
            dimension_semantics=("parallel",),               # no scratch dep -> both TCs on v7x
            vmem_limit_bytes=vmem_limit,
        ),
        cost_estimate=atom_cost,
    )(node_feats, w_aa, A, bias)

    # --- pair path: ReLU(A[...,None] * ReLU(Pf @ W_pp + b_pp) + bias) ---
    R = B * N * N
    tile_r = _pick_row_tile(R, pair_tile_cap)
    pf_flat = pair_feats.reshape(R, P)                       # contiguous collapse: no HBM copy
    a_flat = A.reshape(R, 1)

    pair_cost = pl.CostEstimate(
        flops=2 * R * P * H + 5 * R * H,
        transcendentals=0,
        bytes_accessed=(R * P + P * H + R + 2 * H) * itm + R * H * otm,
    )
    pair_flat = pl.pallas_call(
        _pair_kernel,
        out_shape=jax.ShapeDtypeStruct((R, H), out_dtype),
        grid=(pl.cdiv(R, tile_r),),
        in_specs=[
            pl.BlockSpec((tile_r, P), lambda r: (r, 0)),
            pl.BlockSpec((P, H), lambda r: (0, 0)),
            pl.BlockSpec((1, H), lambda r: (0, 0)),
            pl.BlockSpec((tile_r, 1), lambda r: (r, 0)),
            pl.BlockSpec((1, H), lambda r: (0, 0)),
        ],
        out_specs=pl.BlockSpec((tile_r, H), lambda r: (r, 0)),
        compiler_params=pltpu.CompilerParams(
            dimension_semantics=("parallel",),               # independent row tiles
            vmem_limit_bytes=vmem_limit,
        ),
        cost_estimate=pair_cost,
    )(pf_flat, w_pp, b_pp, a_flat, bias)

    pair_y = pair_flat.reshape(B, N, N, H)
    return atom_y, pair_y


# pure-JAX reference for correctness check
def _reference(node_feats, pair_feats, A, params):
    atom_module = node_feats @ params["w_aa"]
    pair_module = jax.nn.relu(pair_feats @ params["w_pp"] + params["b_pp"])
    atom_y = jax.nn.relu(jnp.einsum("bij,bjh->bih", A, atom_module) + params["bias"])
    pair_y = jax.nn.relu(A[..., None] * pair_module + params["bias"])
    return atom_y, pair_y


if __name__ == "__main__":
    # small, module-consistent shapes; n_hidden=128 keeps output stores lane-dense
    B, N = 2, 8
    n_atom_input_feat, n_pair_input_feat, n_hidden = 16, 16, 128

    key = jax.random.PRNGKey(0)
    k1, k2, k3, k4, k5, k6, k7 = jax.random.split(key, 7)

    node_feats = jax.random.normal(k1, (B, N, n_atom_input_feat), dtype=jnp.float32)
    pair_feats = jax.random.normal(k2, (B, N, N, n_pair_input_feat), dtype=jnp.float32)
    A = (jax.random.uniform(k3, (B, N, N)) > 0.5).astype(jnp.float32)

    # deterministic parameter init (weights stored as [in, out], i.e. W^T of nn.Linear)
    params = {
        "w_aa": jax.random.normal(k4, (n_atom_input_feat, n_hidden), jnp.float32) * 0.1,
        "w_pp": jax.random.normal(k5, (n_pair_input_feat, n_hidden), jnp.float32) * 0.1,
        "b_pp": jax.random.normal(k6, (n_hidden,), jnp.float32) * 0.1,
        # nn.Parameter(t.zeros(n_hidden)) at init; nonzero here to exercise the bias add.
        "bias": jax.random.normal(k7, (n_hidden,), jnp.float32) * 0.1,
    }

    atom_y, pair_y = graph_conv_layer(node_feats, pair_feats, A, params)
    jax.block_until_ready((atom_y, pair_y))

    ref_atom, ref_pair = _reference(node_feats, pair_feats, A, params)
    assert atom_y.shape == (B, N, n_hidden)
    assert pair_y.shape == (B, N, N, n_hidden)
    assert jnp.allclose(atom_y, ref_atom, atol=1e-5, rtol=1e-5)
    assert jnp.allclose(pair_y, ref_pair, atol=1e-5, rtol=1e-5)

    print("KERNEL_OK")
</pallas_src>

<mosaic_0001>
module attributes {stable_mosaic.version = 11 : i64} {
  func.func @_atom_kernel(%arg0: i32, %arg1: memref<2x8x16xf32, #tpu.memory_space<vmem>>, %arg2: memref<16x128xf32, #tpu.memory_space<vmem>>, %arg3: memref<2x8x8xf32, #tpu.memory_space<vmem>>, %arg4: memref<1x128xf32, #tpu.memory_space<vmem>>, %arg5: memref<2x8x128xf32, #tpu.memory_space<vmem>>) attributes {dimension_semantics = [#tpu.dimension_semantics<parallel>], iteration_bounds = array<i64: 1>, scalar_prefetch = 0 : i64, scratch_operands = 0 : i64, tpu.core_type = #tpu.core_type<tc>, window_params = [{transform_indices = @transform_0, window_bounds = array<i64: 2, 8, 16>}, {pipeline_mode = #tpu.pipeline_mode<synchronous>, transform_indices = @transform_1, window_bounds = array<i64: 16, 128>}, {transform_indices = @transform_2, window_bounds = array<i64: 2, 8, 8>}, {pipeline_mode = #tpu.pipeline_mode<synchronous>, transform_indices = @transform_3, window_bounds = array<i64: 1, 128>}, {transform_indices = @transform_4, window_bounds = array<i64: 2, 8, 128>}]} {
    %c0 = arith.constant 0 : index
    %c0_0 = arith.constant 0 : index
    %c0_1 = arith.constant 0 : index
    %0 = vector.load %arg1[%c0, %c0_0, %c0_1] : memref<2x8x16xf32, #tpu.memory_space<vmem>>, vector<1x8x16xf32>
    %1 = vector.shape_cast %0 : vector<1x8x16xf32> to vector<8x16xf32>
    %c0_2 = arith.constant 0 : index
    %c0_3 = arith.constant 0 : index
    %2 = vector.load %arg2[%c0_2, %c0_3] : memref<16x128xf32, #tpu.memory_space<vmem>>, vector<16x128xf32>
    %cst = arith.constant dense<0.000000e+00> : vector<8x128xf32>
    %3 = tpu.matmul %1, %2, %cst {dimension_numbers = #tpu.dot_dimension_numbers<[1], [0], [0], [1], [0, 0, 1, 1], [], []>} : vector<8x16xf32>, vector<16x128xf32>, vector<8x128xf32> -> vector<8x128xf32>
    %c0_4 = arith.constant 0 : index
    %c0_5 = arith.constant 0 : index
    %c0_6 = arith.constant 0 : index
    %4 = vector.load %arg3[%c0_4, %c0_5, %c0_6] : memref<2x8x8xf32, #tpu.memory_space<vmem>>, vector<1x8x8xf32>
    %5 = vector.shape_cast %4 : vector<1x8x8xf32> to vector<8x8xf32>
    %cst_7 = arith.constant dense<0.000000e+00> : vector<8x128xf32>
    %6 = tpu.matmul %5, %3, %cst_7 {dimension_numbers = #tpu.dot_dimension_numbers<[1], [0], [0], [1], [0, 0, 1, 1], [], []>} : vector<8x8xf32>, vector<8x128xf32>, vector<8x128xf32> -> vector<8x128xf32>
    %c0_8 = arith.constant 0 : index
    %c0_9 = arith.constant 0 : index
    %7 = vector.load %arg4[%c0_8, %c0_9] : memref<1x128xf32, #tpu.memory_space<vmem>>, vector<1x128xf32>
    %8 = vector.broadcast %7 : vector<1x128xf32> to vector<8x128xf32>
    %9 = arith.addf %6, %8 : vector<8x128xf32>
    %cst_10 = arith.constant 0.000000e+00 : f32
    %10 = vector.broadcast %cst_10 : f32 to vector<8x128xf32>
    %11 = arith.maximumf %9, %10 : vector<8x128xf32>
    %c0_11 = arith.constant 0 : index
    %c0_12 = arith.constant 0 : index
    %c0_13 = arith.constant 0 : index
    %12 = vector.load %arg5[%c0_11, %c0_12, %c0_13] : memref<2x8x128xf32, #tpu.memory_space<vmem>>, vector<1x8x128xf32>
    %13 = vector.shape_cast %12 : vector<1x8x128xf32> to vector<8x128xf32>
    %14 = vector.shape_cast %11 : vector<8x128xf32> to vector<1x8x128xf32>
    tpu.vector_store %arg5[%c0_11, %c0_12, %c0_13], %14 {strides = array<i32>} : memref<2x8x128xf32, #tpu.memory_space<vmem>>, vector<1x8x128xf32>,
    %c1 = arith.constant 1 : index
    %c0_14 = arith.constant 0 : index
    %c0_15 = arith.constant 0 : index
    %15 = vector.load %arg1[%c1, %c0_14, %c0_15] : memref<2x8x16xf32, #tpu.memory_space<vmem>>, vector<1x8x16xf32>
    %16 = vector.shape_cast %15 : vector<1x8x16xf32> to vector<8x16xf32>
    %c0_16 = arith.constant 0 : index
    %c0_17 = arith.constant 0 : index
    %17 = vector.load %arg2[%c0_16, %c0_17] : memref<16x128xf32, #tpu.memory_space<vmem>>, vector<16x128xf32>
    %cst_18 = arith.constant dense<0.000000e+00> : vector<8x128xf32>
    %18 = tpu.matmul %16, %17, %cst_18 {dimension_numbers = #tpu.dot_dimension_numbers<[1], [0], [0], [1], [0, 0, 1, 1], [], []>} : vector<8x16xf32>, vector<16x128xf32>, vector<8x128xf32> -> vector<8x128xf32>
    %c1_19 = arith.constant 1 : index
    %c0_20 = arith.constant 0 : index
    %c0_21 = arith.constant 0 : index
    %19 = vector.load %arg3[%c1_19, %c0_20, %c0_21] : memref<2x8x8xf32, #tpu.memory_space<vmem>>, vector<1x8x8xf32>
    %20 = vector.shape_cast %19 : vector<1x8x8xf32> to vector<8x8xf32>
    %cst_22 = arith.constant dense<0.000000e+00> : vector<8x128xf32>
    %21 = tpu.matmul %20, %18, %cst_22 {dimension_numbers = #tpu.dot_dimension_numbers<[1], [0], [0], [1], [0, 0, 1, 1], [], []>} : vector<8x8xf32>, vector<8x128xf32>, vector<8x128xf32> -> vector<8x128xf32>
    %c0_23 = arith.constant 0 : index
    %c0_24 = arith.constant 0 : index
    %22 = vector.load %arg4[%c0_23, %c0_24] : memref<1x128xf32, #tpu.memory_space<vmem>>, vector<1x128xf32>
    %23 = vector.broadcast %22 : vector<1x128xf32> to vector<8x128xf32>
    %24 = arith.addf %21, %23 : vector<8x128xf32>
    %cst_25 = arith.constant 0.000000e+00 : f32
    %25 = vector.broadcast %cst_25 : f32 to vector<8x128xf32>
    %26 = arith.maximumf %24, %25 : vector<8x128xf32>
    %c1_26 = arith.constant 1 : index
    %c0_27 = arith.constant 0 : index
    %c0_28 = arith.constant 0 : index
    %27 = vector.load %arg5[%c1_26, %c0_27, %c0_28] : memref<2x8x128xf32, #tpu.memory_space<vmem>>, vector<1x8x128xf32>
    %28 = vector.shape_cast %27 : vector<1x8x128xf32> to vector<8x128xf32>
    %29 = vector.shape_cast %26 : vector<8x128xf32> to vector<1x8x128xf32>
    tpu.vector_store %arg5[%c1_26, %c0_27, %c0_28], %29 {strides = array<i32>} : memref<2x8x128xf32, #tpu.memory_space<vmem>>, vector<1x8x128xf32>,
    return
  }
  func.func @transform_0(%arg0: i32) -> (i32, i32, i32) {
    %c0_i32 = arith.constant 0 : i32
    %c0_i32_0 = arith.constant 0 : i32
    %c0_i32_1 = arith.constant 0 : i32
    return %arg0, %c0_i32, %c0_i32_0 : i32, i32, i32
  }
  func.func @transform_1(%arg0: i32) -> (i32, i32) {
    %c0_i32 = arith.constant 0 : i32
    %c0_i32_0 = arith.constant 0 : i32
    %c0_i32_1 = arith.constant 0 : i32
    return %c0_i32, %c0_i32_0 : i32, i32
  }
  func.func @transform_2(%arg0: i32) -> (i32, i32, i32) {
    %c0_i32 = arith.constant 0 : i32
    %c0_i32_0 = arith.constant 0 : i32
    %c0_i32_1 = arith.constant 0 : i32
    return %arg0, %c0_i32, %c0_i32_0 : i32, i32, i32
  }
  func.func @transform_3(%arg0: i32) -> (i32, i32) {
    %c0_i32 = arith.constant 0 : i32
    %c0_i32_0 = arith.constant 0 : i32
    %c0_i32_1 = arith.constant 0 : i32
    return %c0_i32, %c0_i32_0 : i32, i32
  }
  func.func @transform_4(%arg0: i32) -> (i32, i32, i32) {
    %c0_i32 = arith.constant 0 : i32
    %c0_i32_0 = arith.constant 0 : i32
    %c0_i32_1 = arith.constant 0 : i32
    return %arg0, %c0_i32, %c0_i32_0 : i32, i32, i32
  }
}

</mosaic_0001>

<llo_original>
// kernel: tpu_custom_call.1
$region0: #{tpu_custom_call.1}
  #allocation0 [shape = 'u32[]', space=smem, size = 0x4, offset = 0x4, fixed_abs, tag = 'smem constant byte address 0x4 - core index']
  #allocation1 [shape = 'u32[72,128]{1,0:T(1,128)}', space=vmem, size = 0x9000, scoped, tag = 'internal scratch']
  %s0 = inlined_call_operand.hbm [shape: f32[2,8,16], index: 0, kind: input, shape index: {}]
  %s1 = inlined_call_operand.hbm [shape: f32[16,128], index: 1, kind: input, shape index: {}]
  %s2 = inlined_call_operand.hbm [shape: f32[2,8,8], index: 2, kind: input, shape index: {}]
  %s3 = inlined_call_operand.vmem [shape: f32[1,128], index: 3, kind: input, shape index: {}]
  %s4 = inlined_call_operand.hbm [shape: f32[2,8,128], index: 4, kind: output, shape index: {}]
  %s5 = sld [smem:[#allocation0]]
  $region38: #{tpu_custom_call.1} parent=0
    _
  %s7 = ssub.s32 1, %s5
  %s8 = scalar_select 0, %s7, %s5
  $region1: #{tpu_custom_call.1} parent=0
    #allocation2 [shape = 'u8[8192]{0}', space=vmem, size = 0x2000, scoped, tag = 'input window, operand 0, single buffered']
    #allocation3 [shape = 's32[1]{0}', space=sflag, size = 0x4, scoped, tag = 'scoped memory for tpu_custom_call.1']
    #allocation4 [shape = 's32[1]{0}', space=sflag, size = 0x4, scoped, tag = 'scoped memory for tpu_custom_call.1']
    #allocation5 [shape = 'u8[8192]{0}', space=vmem, size = 0x2000, scoped, tag = 'input window, operand 1, single buffered']
    #allocation6 [shape = 's32[1]{0}', space=sflag, size = 0x4, scoped, tag = 'scoped memory for tpu_custom_call.1']
    #allocation7 [shape = 'u8[8192]{0}', space=vmem, size = 0x2000, scoped, tag = 'input window, operand 2, single buffered']
    #allocation8 [shape = 'u8[8192]{0}', space=vmem, size = 0x2000, scoped, tag = 'output window, operand 0, single buffered']
    %9 = vsyncpa [#allocation3], 0
    %10 = vsyncpa [#allocation6], 0
    %11 = vsyncpa [#allocation4], 0
    // Predicated region
    $region2: #{tpu_custom_call.1} parent=1 // pred_check
      _
    $region3: #{tpu_custom_call.1} parent=1 // pred_check_branch
      %13 = sbr.rel (0) target = $region5
    $region4: #{tpu_custom_call.1} parent=1 // pred_region
      %15 = vsyncadd [#allocation3], 0
      %s16 = sshll.u32 %s0, 4
      %s17 = int_to_ptr.hbm [resolvable:$true] %s16
      %s18 = sshll.u32 [#allocation2], 4
      %s19 = int_to_ptr.vmem [resolvable:$true] %s18
      %24 = dma.hbm_to_vmem [thread:$0]  %s17, 256, %s19, [#allocation3], 128, 128, 8
    $region5: #{tpu_custom_call.1} parent=1 // pred_fallthru
      _
    // Predicated region
    $region6: #{tpu_custom_call.1} parent=1 // pred_check
      _
    $region7: #{tpu_custom_call.1} parent=1 // pred_check_branch
      %26 = sbr.rel (0) target = $region9
    $region8: #{tpu_custom_call.1} parent=1 // pred_region
      %28 = vsyncadd [#allocation6], 0
      %s29 = sshll.u32 %s1, 4
      %s30 = int_to_ptr.hbm [resolvable:$true] %s29
      %s31 = sshll.u32 [#allocation5], 4
      %s32 = int_to_ptr.vmem [resolvable:$true] %s31
      %37 = dma.hbm_to_vmem [thread:$0]  %s30, 256, %s32, [#allocation6], 128, 128, 8
    $region9: #{tpu_custom_call.1} parent=1 // pred_fallthru
      _
    // Predicated region
    $region10: #{tpu_custom_call.1} parent=1 // pred_check
      _
    $region11: #{tpu_custom_call.1} parent=1 // pred_check_branch
      %39 = sbr.rel (0) target = $region13
    $region12: #{tpu_custom_call.1} parent=1 // pred_region
      %41 = vsyncadd [#allocation6], 0
      %s42 = sshll.u32 %s2, 4
      %s43 = int_to_ptr.hbm [resolvable:$true] %s42
      %s44 = sshll.u32 [#allocation7], 4
      %s45 = int_to_ptr.vmem [resolvable:$true] %s44
      %50 = dma.hbm_to_vmem [thread:$0]  %s43, 256, %s45, [#allocation6], 128, 128, 8
    $region13: #{tpu_custom_call.1} parent=1 // pred_fallthru
      _
    // Predicated region
    $region14: #{tpu_custom_call.1} parent=1 // pred_check
      _
    $region15: #{tpu_custom_call.1} parent=1 // pred_check_branch
      %52 = sbr.rel (0) target = $region17
    $region16: #{tpu_custom_call.1} parent=1 // pred_region
      _
    $region17: #{tpu_custom_call.1} parent=1 // pred_fallthru
      _
    // Predicated region
    $region18: #{tpu_custom_call.1} parent=1 // pred_check
      _
    $region19: #{tpu_custom_call.1} parent=1 // pred_check_branch
      %54 = sbr.rel (0) target = $region21
    $region20: #{tpu_custom_call.1} parent=1 // pred_region
      %56 = dma.done [#allocation3], 256
    $region21: #{tpu_custom_call.1} parent=1 // pred_fallthru
      _
    // Predicated region
    $region22: #{tpu_custom_call.1} parent=1 // pred_check
      _
    $region23: #{tpu_custom_call.1} parent=1 // pred_check_branch
      %58 = sbr.rel (0) target = $region25
    $region24: #{tpu_custom_call.1} parent=1 // pred_region
      %60 = dma.done [#allocation6], 256
    $region25: #{tpu_custom_call.1} parent=1 // pred_fallthru
      _
    // Predicated region
    $region26: #{tpu_custom_call.1} parent=1 // pred_check
      _
    $region27: #{tpu_custom_call.1} parent=1 // pred_check_branch
      %62 = sbr.rel (0) target = $region29
    $region28: #{tpu_custom_call.1} parent=1 // pred_region
      %64 = dma.done [#allocation6], 256
    $region29: #{tpu_custom_call.1} parent=1 // pred_fallthru
      _
    %v65 = vld [vmem:[#allocation2] sm:$0xff]
    %v66 = vld [vmem:[#allocation5] sm:$0xff]
    %v67 = vld [vmem:[#allocation5 + $0x8] sm:$0xff]
    %vm68 = vcmask 130048
    %v70 = vsel %vm68, %v65, 0
    %72 = vmatpush.msra.mxu0 0.0
    %73 = vmatpush.msra.mxu0 0.0
    %74 = vmatpush.msra.mxu0 0.0
    %75 = vmatpush.msra.mxu0 0.0
    %76 = vmatpush.msra.mxu0 0.0
    %77 = vmatpush.msra.mxu0 0.0
    %78 = vmatpush.msra.mxu0 0.0
    %79 = vmatpush.msra.mxu0 0.0
    %80 = vmatpush.msra.mxu0 0.0
    %81 = vmatpush.msra.mxu0 0.0
    %82 = vmatpush.msra.mxu0 0.0
    %83 = vmatpush.msra.mxu0 0.0
    %84 = vmatpush.msra.mxu0 0.0
    %85 = vmatpush.msra.mxu0 0.0
    %86 = vmatpush.msra.mxu0 %v67
    %87 = vmatpush.msra.mxu0 %v66
    %88 = vmatmul.f32.gmra.mxu0 %v70
    %v89 = vpop.f32.mrf.mxu0
    %v90 = vadd.f32 0.0, %v89
    %91 = vdwg.mxu0
    %v92 = vld [vmem:[#allocation7] sm:$0xff]
    %v93 = vld [vmem:[%s3] sm:$0x1]
    %v95 = vperm.slane %v93, 0
    %vm97 = vcmask 64512
    %v99 = vsel %vm97, %v92, 0
    %101 = vmatpush.msra.mxu0 0.0
    %102 = vmatpush.msra.mxu0 0.0
    %103 = vmatpush.msra.mxu0 0.0
    %104 = vmatpush.msra.mxu0 0.0
    %105 = vmatpush.msra.mxu0 0.0
    %106 = vmatpush.msra.mxu0 0.0
    %107 = vmatpush.msra.mxu0 0.0
    %108 = vmatpush.msra.mxu0 0.0
    %109 = vmatpush.msra.mxu0 0.0
    %110 = vmatpush.msra.mxu0 0.0
    %111 = vmatpush.msra.mxu0 0.0
    %112 = vmatpush.msra.mxu0 0.0
    %113 = vmatpush.msra.mxu0 0.0
    %114 = vmatpush.msra.mxu0 0.0
    %115 = vmatpush.msra.mxu0 0.0
    %116 = vmatpush.msra.mxu0 %v90
    %117 = vmatmul.f32.gmra.mxu0 %v99
    %v118 = vpop.f32.mrf.mxu0
    %v119 = vadd.f32 %v95, %v118
    %120 = vdwg.mxu0
    %v121 = vmax.f32 %v119, 0.0
    %122 = vst [vmem:[#allocation8] sm:$0xff] %v121
    %s123 = scalar_lea.vmem [#allocation2], 8
    %v124 = vld [vmem:[%s123] sm:$0xff]
    %v125 = vld [vmem:[#allocation5] sm:$0xff]
    %v126 = vld [vmem:[#allocation5 + $0x8] sm:$0xff]
    %v128 = vsel %vm68, %v124, 0
    %130 = vmatpush.msra.mxu0 0.0
    %131 = vmatpush.msra.mxu0 0.0
    %132 = vmatpush.msra.mxu0 0.0
    %133 = vmatpush.msra.mxu0 0.0
    %134 = vmatpush.msra.mxu0 0.0
    %135 = vmatpush.msra.mxu0 0.0
    %136 = vmatpush.msra.mxu0 0.0
    %137 = vmatpush.msra.mxu0 0.0
    %138 = vmatpush.msra.mxu0 0.0
    %139 = vmatpush.msra.mxu0 0.0
    %140 = vmatpush.msra.mxu0 0.0
    %141 = vmatpush.msra.mxu0 0.0
    %142 = vmatpush.msra.mxu0 0.0
    %143 = vmatpush.msra.mxu0 0.0
    %144 = vmatpush.msra.mxu0 %v126
    %145 = vmatpush.msra.mxu0 %v125
    %146 = vmatmul.f32.gmra.mxu0 %v128
    %v147 = vpop.f32.mrf.mxu0
    %v148 = vadd.f32 0.0, %v147
    %149 = vdwg.mxu0
    %s150 = scalar_lea.vmem [#allocation7], 8
    %v151 = vld [vmem:[%s150] sm:$0xff]
    %v152 = vld [vmem:[%s3] sm:$0x1]
    %v154 = vperm.slane %v152, 0
    %v157 = vsel %vm97, %v151, 0
    %159 = vmatpush.msra.mxu0 0.0
    %160 = vmatpush.msra.mxu0 0.0
    %161 = vmatpush.msra.mxu0 0.0
    %162 = vmatpush.msra.mxu0 0.0
    %163 = vmatpush.msra.mxu0 0.0
    %164 = vmatpush.msra.mxu0 0.0
    %165 = vmatpush.msra.mxu0 0.0
    %166 = vmatpush.msra.mxu0 0.0
    %167 = vmatpush.msra.mxu0 0.0
    %168 = vmatpush.msra.mxu0 0.0
    %169 = vmatpush.msra.mxu0 0.0
    %170 = vmatpush.msra.mxu0 0.0
    %171 = vmatpush.msra.mxu0 0.0
    %172 = vmatpush.msra.mxu0 0.0
    %173 = vmatpush.msra.mxu0 0.0
    %174 = vmatpush.msra.mxu0 %v148
    %175 = vmatmul.f32.gmra.mxu0 %v157
    %v176 = vpop.f32.mrf.mxu0
    %v177 = vadd.f32 %v154, %v176
    %178 = vdwg.mxu0
    %v179 = vmax.f32 %v177, 0.0
    %s180 = scalar_lea.vmem [#allocation8], 8
    %181 = vst [vmem:[%s180] sm:$0xff] %v179
    // Predicated region
    $region30: #{tpu_custom_call.1} parent=1 // pred_check
      _
    $region31: #{tpu_custom_call.1} parent=1 // pred_check_branch
      %183 = sbr.rel (0) target = $region33
    $region32: #{tpu_custom_call.1} parent=1 // pred_region
      %185 = vsyncadd [#allocation4], 0
      %s186 = sshll.u32 [#allocation8], 4
      %s187 = int_to_ptr.vmem [resolvable:$true] %s186
      %s188 = sshll.u32 %s4, 4
      %s189 = int_to_ptr.hbm [resolvable:$true] %s188
      %194 = dma.vmem_to_hbm [thread:$0]  %s187, 256, %s189, [#allocation4], 128, 128, 8
    $region33: #{tpu_custom_call.1} parent=1 // pred_fallthru
      _
    // Predicated region
    $region34: #{tpu_custom_call.1} parent=1 // pred_check
      _
    $region35: #{tpu_custom_call.1} parent=1 // pred_check_branch
      %196 = sbr.rel (0) target = $region37
    $region36: #{tpu_custom_call.1} parent=1 // pred_region
      %198 = dma.done [#allocation4], 256
    $region37: #{tpu_custom_call.1} parent=1 // pred_fallthru
      _
    %199 = vsyncpa [#allocation3], 1
    %200 = vsyncpa [#allocation6], 1
    %201 = vsyncpa [#allocation4], 1

</llo_original>
